<compile_context>
chip_gen: v6e
topology: v6e:2x2x1
jax: 0.10.0
libtpu: 0.0.40
codegen_flags: <defaults>
</compile_context>

<pallas_src>
import functools

import jax
import jax.numpy as jnp
from jax.experimental import pallas as pl
from jax.experimental.pallas import tpu as pltpu

LANE = 128
SUBLANE = 8
DEFAULT_BLOCK_ROWS = 2048  # tuning knob; sweep 2048/4096 for very large inputs


def _focal_loss_kernel(
    x_ref,
    t_ref,
    out_ref,
    *,
    gamma,
    alpha,
    block_rows,
    steps_per_core,
    nblocks,
    n_full_rows_local,
    lane_rem,
    needs_mask,
    approx_recip,
):
    c = pl.program_id(0)          # core-split ("parallel") axis
    j = pl.program_id(1)          # streaming reduction ("arbitrary") axis
    gid = c * steps_per_core + j  # global block id (small ints; int32-safe)

    # Per-core partial-sum accumulator lives in the resident output block.
    @pl.when(j == 0)
    def _():
        out_ref[...] = jnp.zeros_like(out_ref)

    x = x_ref[...].astype(jnp.float32)
    t = t_ref[...].astype(jnp.float32)

    # Fused sigmoid + numerically-stable BCE-with-logits sharing e = exp(-|x|):
    #   p  = sigmoid(x) = where(x >= 0, 1/(1+e), 1 - 1/(1+e))
    #   ce = max(x, 0) - x*t + log1p(e)
    e = jnp.exp(-jnp.abs(x))
    one_p_e = 1.0 + e
    if approx_recip:
        inv = pl.reciprocal(one_p_e, approx=True)   # EUP vrcp, frees divide
    else:
        inv = 1.0 / one_p_e
    p = jnp.where(x >= 0.0, inv, 1.0 - inv)
    ce = jnp.maximum(x, 0.0) - x * t + jnp.log1p(e)

    # 1 - p_t, with p_t = p*t + (1-p)*(1-t)  ==>  1 - p_t = p + t - 2*p*t
    one_m_pt = p + t - 2.0 * (p * t)
    if gamma == 2.0:
        focal = one_m_pt * one_m_pt
    elif gamma == 1.0:
        focal = one_m_pt
    elif gamma == 0.0:
        focal = None
    else:
        focal = one_m_pt ** gamma  # general (non-integer) gamma: log/exp path
    loss = ce if focal is None else ce * focal
    if alpha >= 0:
        alpha_t = (1.0 - alpha) + (2.0 * alpha - 1.0) * t
        loss = alpha_t * loss

    def accumulate(vals):
        # Fold (block_rows, 128) -> (8, 128): pure VPU adds, tiny accumulator.
        out_ref[...] += vals.reshape(block_rows // SUBLANE, SUBLANE, LANE).sum(axis=0)

    last = nblocks - 1

    @pl.when(gid < last)
    def _():
        accumulate(loss)

    @pl.when(gid == last)
    def _():
        if needs_mask:
            # Only the globally-last block contains lane-pad / partial-block
            # garbage.  Static row-count + lane-remainder compares; keep it a
            # select so NaN/Inf from garbage logits never reaches the sum.
            rid = jax.lax.broadcasted_iota(jnp.int32, (block_rows, LANE), 0)
            cid = jax.lax.broadcasted_iota(jnp.int32, (block_rows, LANE), 1)
            valid = (rid < n_full_rows_local) | (
                (rid == n_full_rows_local) & (cid < lane_rem)
            )
            accumulate(jnp.where(valid, loss, 0.0))
        else:
            accumulate(loss)
    # gid > last (duplicate block on the second core when nblocks is odd):
    # neither branch fires -> contributes nothing.


def focal_loss(
    inputs,
    targets,
    gamma=2.0,
    alpha=0.25,
    reduction="mean",
    block_rows=DEFAULT_BLOCK_ROWS,
    approx_reciprocal=True,
):
    """Sigmoid focal loss over arbitrary-shaped logits / targets (same shape).

    Pass logits/targets in their native (possibly narrow) dtypes — bf16 logits
    and int8/bool targets halve/quarter HBM traffic; the kernel upcasts to f32
    in VMEM.
    """
    assert inputs.shape == targets.shape
    assert reduction in ("mean", "sum")
    assert block_rows % SUBLANE == 0

    n = int(inputs.size)
    x = inputs.reshape(-1)
    t = targets.reshape(-1)

    # Pad the flat tail to a multiple of 8*128 so the (rows, 128) layout is
    # sublane-aligned.  No copy at all when n is already a multiple of 1024.
    pad = (-n) % (SUBLANE * LANE)
    if pad:
        x = jnp.pad(x, (0, pad))
        t = jnp.pad(t, (0, pad))
    rows = (n + pad) // LANE           # multiple of 8

    block_rows = min(block_rows, rows)  # both multiples of 8
    x = x.reshape(rows, LANE)
    t = t.reshape(rows, LANE)

    nblocks = (rows + block_rows - 1) // block_rows
    needs_mask = nblocks * block_rows * LANE != n

    # v7x: 2 TensorCores -> leading "parallel" axis; v5e/v6e just loop it.
    num_cores = 2 if nblocks >= 2 else 1
    steps_per_core = (nblocks + num_cores - 1) // num_cores

    # Static mask constants for the globally-last block.
    base = (nblocks - 1) * block_rows * LANE
    rem = n - base                     # in (0, block_rows*128]
    n_full_rows_local = rem // LANE
    lane_rem = rem % LANE

    kernel = functools.partial(
        _focal_loss_kernel,
        gamma=float(gamma),
        alpha=float(alpha),
        block_rows=block_rows,
        steps_per_core=steps_per_core,
        nblocks=nblocks,
        n_full_rows_local=n_full_rows_local,
        lane_rem=lane_rem,
        needs_mask=needs_mask,
        approx_recip=approx_reciprocal,
    )

    def in_map(c, j):
        # Clamp the (at most one) overhanging block on the second core back to
        # the last valid block; its contribution is skipped in-kernel.
        return (jnp.minimum(c * steps_per_core + j, nblocks - 1), 0)

    partials = pl.pallas_call(
        kernel,
        out_shape=jax.ShapeDtypeStruct((num_cores * SUBLANE, LANE), jnp.float32),
        grid_spec=pltpu.PrefetchScalarGridSpec(
            num_scalar_prefetch=0,
            grid=(num_cores, steps_per_core),
            in_specs=[
                pl.BlockSpec((block_rows, LANE), in_map),
                pl.BlockSpec((block_rows, LANE), in_map),
            ],
            # Per-core (8, 128) partial-sum block, resident across the
            # "arbitrary" axis (accumulator pattern), lane-dense stores.
            out_specs=pl.BlockSpec((SUBLANE, LANE), lambda c, j: (c, 0)),
        ),
        compiler_params=pltpu.CompilerParams(
            dimension_semantics=("parallel", "arbitrary"),
        ),
    )(x, t)

    total = jnp.sum(partials)  # tiny (<=2048 element) reduce in the wrapper
    if reduction == "mean":
        return total / jnp.float32(n)
    return total


def _focal_loss_ref(inputs, targets, gamma=2.0, alpha=0.25, reduction="mean"):
    # plain-JAX reference mirroring the PyTorch forward
    x = inputs.astype(jnp.float32)
    t = targets.astype(jnp.float32)
    p = jax.nn.sigmoid(x)
    ce = jnp.maximum(x, 0.0) - x * t + jnp.log1p(jnp.exp(-jnp.abs(x)))
    p_t = p * t + (1.0 - p) * (1.0 - t)
    loss = ce * (1.0 - p_t) ** gamma
    if alpha >= 0:
        alpha_t = alpha * t + (1.0 - alpha) * (1.0 - t)
        loss = alpha_t * loss
    return loss.mean() if reduction == "mean" else loss.sum()


if __name__ == "__main__":
    key = jax.random.PRNGKey(0)
    k1, k2, k3, k4, k5, k6 = jax.random.split(key, 6)

    # 1) NCHW case, 2048 elements (multiple of 1024 -> no pad, no mask path)
    B, C, H, W = 2, 4, 16, 16
    logits = jax.random.normal(k1, (B, C, H, W), dtype=jnp.float32)
    targets = (jax.random.uniform(k2, (B, C, H, W)) > 0.5).astype(jnp.float32)
    ref = _focal_loss_ref(logits, targets, gamma=2.0, alpha=0.25)

    out_exact = jax.block_until_ready(
        focal_loss(logits, targets, gamma=2.0, alpha=0.25, approx_reciprocal=False))
    assert jnp.allclose(out_exact, ref, rtol=1e-5, atol=1e-6), (out_exact, ref)

    out_approx = jax.block_until_ready(
        focal_loss(logits, targets, gamma=2.0, alpha=0.25, approx_reciprocal=True))
    assert jnp.allclose(out_approx, ref, rtol=5e-3, atol=1e-5), (out_approx, ref)

    # 2) ragged size (exercises pad + in-kernel tail mask)
    shp = (3, 5, 7, 9)  # 945 elements, not a multiple of 128
    logits2 = 3.0 * jax.random.normal(k3, shp, dtype=jnp.float32)
    targets2 = (jax.random.uniform(k4, shp) > 0.5).astype(jnp.float32)
    ref2 = _focal_loss_ref(logits2, targets2, gamma=2.0, alpha=0.25)
    out2 = jax.block_until_ready(
        focal_loss(logits2, targets2, gamma=2.0, alpha=0.25, approx_reciprocal=False))
    assert jnp.allclose(out2, ref2, rtol=1e-5, atol=1e-6), (out2, ref2)

    # 3) multi-block + 2-way core split + odd block count (duplicate skip) +
    #    partial last block, sum reduction (small block_rows just to exercise it)
    shp3 = (4, 4, 32, 32)  # 16384 elements = 128 rows of 128
    logits3 = jax.random.normal(k5, shp3, dtype=jnp.float32)
    targets3 = (jax.random.uniform(k6, shp3) > 0.5).astype(jnp.float32)
    ref3 = _focal_loss_ref(logits3, targets3, reduction="sum")
    out3 = jax.block_until_ready(
        focal_loss(logits3, targets3, reduction="sum", block_rows=48,
                   approx_reciprocal=False))
    assert jnp.allclose(out3, ref3, rtol=1e-4, atol=1e-3), (out3, ref3)

    print("KERNEL_OK")
</pallas_src>

<mosaic_0001>
module attributes {stable_mosaic.version = 11 : i64} {
  func.func @_focal_loss_kernel(%arg0: i32, %arg1: i32, %arg2: memref<16x128xf32, #tpu.memory_space<vmem>>, %arg3: memref<16x128xf32, #tpu.memory_space<vmem>>, %arg4: memref<8x128xf32, #tpu.memory_space<vmem>>) attributes {dimension_semantics = [#tpu.dimension_semantics<parallel>, #tpu.dimension_semantics<arbitrary>], iteration_bounds = array<i64: 1, 1>, scalar_prefetch = 0 : i64, scratch_operands = 0 : i64, tpu.core_type = #tpu.core_type<tc>, window_params = [{transform_indices = @transform_0, window_bounds = array<i64: 16, 128>}, {transform_indices = @transform_1, window_bounds = array<i64: 16, 128>}, {transform_indices = @transform_2, window_bounds = array<i64: 8, 128>}]} {
    %c1_i32 = arith.constant 1 : i32
    %0 = arith.muli %arg0, %c1_i32 : i32
    %1 = arith.addi %0, %arg1 : i32
    %c0_i32 = arith.constant 0 : i32
    %2 = arith.cmpi eq, %arg1, %c0_i32 : i32
    %3 = arith.extui %2 : i1 to i32
    %c0_i32_0 = arith.constant 0 : i32
    %4 = arith.cmpi ne, %3, %c0_i32_0 : i32
    scf.if %4 {
      %cst_16 = arith.constant 0.000000e+00 : f32
      %44 = vector.broadcast %cst_16 : f32 to vector<8x128xf32>
      %c0_17 = arith.constant 0 : index
      %c0_18 = arith.constant 0 : index
      %45 = vector.load %arg4[%c0_17, %c0_18] : memref<8x128xf32, #tpu.memory_space<vmem>>, vector<8x128xf32>
      tpu.vector_store %arg4[%c0_17, %c0_18], %44 {strides = array<i32>} : memref<8x128xf32, #tpu.memory_space<vmem>>, vector<8x128xf32>,
    } else {
    }
    %c0 = arith.constant 0 : index
    %c0_1 = arith.constant 0 : index
    %5 = vector.load %arg2[%c0, %c0_1] : memref<16x128xf32, #tpu.memory_space<vmem>>, vector<16x128xf32>
    %c0_2 = arith.constant 0 : index
    %c0_3 = arith.constant 0 : index
    %6 = vector.load %arg3[%c0_2, %c0_3] : memref<16x128xf32, #tpu.memory_space<vmem>>, vector<16x128xf32>
    %7 = math.absf %5 : vector<16x128xf32>
    %cst = arith.constant 0.000000e+00 : f32
    %8 = vector.broadcast %cst : f32 to vector<16x128xf32>
    %9 = arith.subf %8, %7 : vector<16x128xf32>
    %10 = math.exp %9 : vector<16x128xf32>
    %cst_4 = arith.constant 1.000000e+00 : f32
    %11 = vector.broadcast %cst_4 : f32 to vector<16x128xf32>
    %12 = arith.addf %11, %10 : vector<16x128xf32>
    %cst_5 = arith.constant 1.000000e+00 : f32
    %13 = vector.broadcast %cst_5 : f32 to vector<16x128xf32>
    %14 = arith.divf %13, %12 : vector<16x128xf32>
    %cst_6 = arith.constant 0.000000e+00 : f32
    %15 = vector.broadcast %cst_6 : f32 to vector<16x128xf32>
    %16 = arith.cmpf oge, %5, %15 : vector<16x128xf32>
    %cst_7 = arith.constant 1.000000e+00 : f32
    %17 = vector.broadcast %cst_7 : f32 to vector<16x128xf32>
    %18 = arith.subf %17, %14 : vector<16x128xf32>
    %19 = arith.select %16, %14, %18 : vector<16x128xi1>, vector<16x128xf32>
    %cst_8 = arith.constant 0.000000e+00 : f32
    %20 = vector.broadcast %cst_8 : f32 to vector<16x128xf32>
    %21 = arith.maximumf %5, %20 : vector<16x128xf32>
    %22 = arith.mulf %5, %6 : vector<16x128xf32>
    %23 = arith.subf %21, %22 : vector<16x128xf32>
    %24 = math.log1p %10 : vector<16x128xf32>
    %25 = arith.addf %23, %24 : vector<16x128xf32>
    %26 = arith.addf %19, %6 : vector<16x128xf32>
    %27 = arith.mulf %19, %6 : vector<16x128xf32>
    %cst_9 = arith.constant 2.000000e+00 : f32
    %28 = vector.broadcast %cst_9 : f32 to vector<16x128xf32>
    %29 = arith.mulf %28, %27 : vector<16x128xf32>
    %30 = arith.subf %26, %29 : vector<16x128xf32>
    %31 = arith.mulf %30, %30 : vector<16x128xf32>
    %32 = arith.mulf %25, %31 : vector<16x128xf32>
    %cst_10 = arith.constant -5.000000e-01 : f32
    %33 = vector.broadcast %cst_10 : f32 to vector<16x128xf32>
    %34 = arith.mulf %33, %6 : vector<16x128xf32>
    %cst_11 = arith.constant 7.500000e-01 : f32
    %35 = vector.broadcast %cst_11 : f32 to vector<16x128xf32>
    %36 = arith.addf %35, %34 : vector<16x128xf32>
    %37 = arith.mulf %36, %32 : vector<16x128xf32>
    %c0_i32_12 = arith.constant 0 : i32
    %38 = arith.cmpi slt, %1, %c0_i32_12 : i32
    %39 = arith.extui %38 : i1 to i32
    %c0_i32_13 = arith.constant 0 : i32
    %40 = arith.cmpi ne, %39, %c0_i32_13 : i32
    scf.if %40 {
      %c0_16 = arith.constant 0 : index
      %c0_17 = arith.constant 0 : index
      %44 = vector.load %arg4[%c0_16, %c0_17] : memref<8x128xf32, #tpu.memory_space<vmem>>, vector<8x128xf32>
      %45 = vector.shape_cast %37 : vector<16x128xf32> to vector<2x8x128xf32>
      %cst_18 = arith.constant dense<0.000000e+00> : vector<8x128xf32>
      %46 = vector.multi_reduction <add>, %45, %cst_18 [0] : vector<2x8x128xf32> to vector<8x128xf32>
      %47 = arith.addf %44, %46 : vector<8x128xf32>
      %c0_19 = arith.constant 0 : index
      %c0_20 = arith.constant 0 : index
      %48 = vector.load %arg4[%c0_19, %c0_20] : memref<8x128xf32, #tpu.memory_space<vmem>>, vector<8x128xf32>
      tpu.vector_store %arg4[%c0_19, %c0_20], %47 {strides = array<i32>} : memref<8x128xf32, #tpu.memory_space<vmem>>, vector<8x128xf32>,
    } else {
    }
    %c0_i32_14 = arith.constant 0 : i32
    %41 = arith.cmpi eq, %1, %c0_i32_14 : i32
    %42 = arith.extui %41 : i1 to i32
    %c0_i32_15 = arith.constant 0 : i32
    %43 = arith.cmpi ne, %42, %c0_i32_15 : i32
    scf.if %43 {
      %c0_16 = arith.constant 0 : index
      %c0_17 = arith.constant 0 : index
      %44 = vector.load %arg4[%c0_16, %c0_17] : memref<8x128xf32, #tpu.memory_space<vmem>>, vector<8x128xf32>
      %45 = vector.shape_cast %37 : vector<16x128xf32> to vector<2x8x128xf32>
      %cst_18 = arith.constant dense<0.000000e+00> : vector<8x128xf32>
      %46 = vector.multi_reduction <add>, %45, %cst_18 [0] : vector<2x8x128xf32> to vector<8x128xf32>
      %47 = arith.addf %44, %46 : vector<8x128xf32>
      %c0_19 = arith.constant 0 : index
      %c0_20 = arith.constant 0 : index
      %48 = vector.load %arg4[%c0_19, %c0_20] : memref<8x128xf32, #tpu.memory_space<vmem>>, vector<8x128xf32>
      tpu.vector_store %arg4[%c0_19, %c0_20], %47 {strides = array<i32>} : memref<8x128xf32, #tpu.memory_space<vmem>>, vector<8x128xf32>,
    } else {
    }
    return
  }
  func.func @transform_0(%arg0: i32, %arg1: i32) -> (i32, i32) {
    %c1_i32 = arith.constant 1 : i32
    %0 = arith.muli %arg0, %c1_i32 : i32
    %1 = arith.addi %0, %arg1 : i32
    %c0_i32 = arith.constant 0 : i32
    %2 = arith.minsi %1, %c0_i32 : i32
    %c0_i32_0 = arith.constant 0 : i32
    %c0_i32_1 = arith.constant 0 : i32
    return %2, %c0_i32_0 : i32, i32
  }
  func.func @transform_1(%arg0: i32, %arg1: i32) -> (i32, i32) {
    %c1_i32 = arith.constant 1 : i32
    %0 = arith.muli %arg0, %c1_i32 : i32
    %1 = arith.addi %0, %arg1 : i32
    %c0_i32 = arith.constant 0 : i32
    %2 = arith.minsi %1, %c0_i32 : i32
    %c0_i32_0 = arith.constant 0 : i32
    %c0_i32_1 = arith.constant 0 : i32
    return %2, %c0_i32_0 : i32, i32
  }
  func.func @transform_2(%arg0: i32, %arg1: i32) -> (i32, i32) {
    %c0_i32 = arith.constant 0 : i32
    %c0_i32_0 = arith.constant 0 : i32
    return %arg0, %c0_i32 : i32, i32
  }
}

</mosaic_0001>

<llo_original>
// kernel: tpu_custom_call.1
$region0: #{tpu_custom_call.1}
  #allocation0 [shape = 'u32[]', space=smem, size = 0x4, offset = 0x4, fixed_abs, tag = 'smem constant byte address 0x4 - core index']
  #allocation1 [shape = 'u32[144,128]{1,0:T(1,128)}', space=vmem, size = 0x12000, scoped, tag = 'internal scratch']
  %s0 = inlined_call_operand.hbm [shape: f32[16,128], index: 0, kind: input, shape index: {}]
  %s1 = inlined_call_operand.hbm [shape: f32[16,128], index: 1, kind: input, shape index: {}]
  %s2 = inlined_call_operand.hbm [shape: f32[8,128], index: 2, kind: output, shape index: {}]
  %s3 = sld [smem:[#allocation0]]
  $region38: #{tpu_custom_call.1} parent=0
    _
  %s5 = ssub.s32 1, %s3
  %s6 = scalar_select 0, %s5, %s3
  $region1: #{tpu_custom_call.1} parent=0
    #allocation2 [shape = 'u8[8192]{0}', space=vmem, size = 0x2000, scoped, tag = 'input window, operand 0, single buffered']
    #allocation3 [shape = 's32[1]{0}', space=sflag, size = 0x4, scoped, tag = 'scoped memory for tpu_custom_call.1']
    #allocation4 [shape = 's32[1]{0}', space=sflag, size = 0x4, scoped, tag = 'scoped memory for tpu_custom_call.1']
    #allocation5 [shape = 'u8[8192]{0}', space=vmem, size = 0x2000, scoped, tag = 'input window, operand 1, single buffered']
    #allocation6 [shape = 's32[1]{0}', space=sflag, size = 0x4, scoped, tag = 'scoped memory for tpu_custom_call.1']
    #allocation7 [shape = 'u8[4096]{0}', space=vmem, size = 0x1000, scoped, tag = 'output window, operand 0, single buffered']
    %7 = vsyncpa [#allocation3], 0
    %8 = vsyncpa [#allocation6], 0
    %9 = vsyncpa [#allocation4], 0
    // Predicated region
    $region2: #{tpu_custom_call.1} parent=1 // pred_check
      _
    $region3: #{tpu_custom_call.1} parent=1 // pred_check_branch
      %11 = sbr.rel (0) target = $region5
    $region4: #{tpu_custom_call.1} parent=1 // pred_region
      %s12 = sadd.s32 0, 0
      %p13 = scmp.lt.s32.totalorder %s12, 0
      %s14 = scalar_select %p13, %s12, 0
      %s15 = smul.u32 2, %s14
      %s17 = ssub.s32 256, 256
      %18 = vsyncadd [#allocation3], %s17
      %s19 = smul.addr %s15, 128
      %s20 = scalar_lea.hbm %s0, %s19
      %s21 = sshll.u32 [#allocation2], 4
      %s22 = int_to_ptr.vmem [resolvable:$true] %s21
      %27 = dma.hbm_to_vmem [thread:$0]  %s20, 256, %s22, [#allocation3], 128, 128, 8
    $region5: #{tpu_custom_call.1} parent=1 // pred_fallthru
      _
    // Predicated region
    $region6: #{tpu_custom_call.1} parent=1 // pred_check
      _
    $region7: #{tpu_custom_call.1} parent=1 // pred_check_branch
      %29 = sbr.rel (0) target = $region9
    $region8: #{tpu_custom_call.1} parent=1 // pred_region
      %s30 = sadd.s32 0, 0
      %p31 = scmp.lt.s32.totalorder %s30, 0
      %s32 = scalar_select %p31, %s30, 0
      %s33 = smul.u32 2, %s32
      %s35 = ssub.s32 256, 256
      %36 = vsyncadd [#allocation6], %s35
      %s37 = smul.addr %s33, 128
      %s38 = scalar_lea.hbm %s1, %s37
      %s39 = sshll.u32 [#allocation5], 4
      %s40 = int_to_ptr.vmem [resolvable:$true] %s39
      %45 = dma.hbm_to_vmem [thread:$0]  %s38, 256, %s40, [#allocation6], 128, 128, 8
    $region9: #{tpu_custom_call.1} parent=1 // pred_fallthru
      _
    // Predicated region
    $region10: #{tpu_custom_call.1} parent=1 // pred_check
      _
    $region11: #{tpu_custom_call.1} parent=1 // pred_check_branch
      %47 = sbr.rel (0) target = $region13
    $region12: #{tpu_custom_call.1} parent=1 // pred_region
      %48 = dma.done [#allocation3], 256
    $region13: #{tpu_custom_call.1} parent=1 // pred_fallthru
      _
    // Predicated region
    $region14: #{tpu_custom_call.1} parent=1 // pred_check
      _
    $region15: #{tpu_custom_call.1} parent=1 // pred_check_branch
      %50 = sbr.rel (0) target = $region17
    $region16: #{tpu_custom_call.1} parent=1 // pred_region
      %51 = dma.done [#allocation6], 256
    $region17: #{tpu_custom_call.1} parent=1 // pred_fallthru
      _
    %s52 = sadd.s32 0, 0
    %p53 = scmp.lt.s32.totalorder %s52, 0
    %s54 = scalar_select %p53, %s52, 0
    %s55 = smul.u32 2, %s54
    %s56 = sadd.s32 0, 0
    %p57 = scmp.lt.s32.totalorder %s56, 0
    %s58 = scalar_select %p57, %s56, 0
    %s59 = smul.u32 2, %s58
    %s60 = sadd.s32 0, 0
    %p61 = scmp.eq.s32.totalorder 0, 0
    // Predicated region
    $region18: #{tpu_custom_call.1} parent=1 // pred_check
      %p62 = pneg %p61
    $region19: #{tpu_custom_call.1} parent=1 // pred_check_branch
      %64 = sbr.rel (%p62) target = $region21
    $region20: #{tpu_custom_call.1} parent=1 // pred_region
      %65 = vst [vmem:[#allocation7] sm:$0xff] 0.0
    $region21: #{tpu_custom_call.1} parent=1 // pred_fallthru
      _
    %v66 = vld [vmem:[#allocation2] sm:$0xff]
    %v67 = vld [vmem:[#allocation2 + $0x8] sm:$0xff]
    %v68 = vld [vmem:[#allocation5] sm:$0xff]
    %v69 = vld [vmem:[#allocation5 + $0x8] sm:$0xff]
    %v70 = vand.u32 2147483647, %v66
    %v71 = vand.u32 2147483647, %v67
    %v72 = vsub.f32 0.0, %v70
    %v73 = vsub.f32 0.0, %v71
    %v74 = vmul.f32 %v72, 1.442695
    %v75 = vpow.pop %v74
    %v76 = vmul.f32 %v73, 1.442695
    %v77 = vpow.pop %v76
    %v78 = vadd.f32 %v75, 1.0
    %v79 = vadd.f32 %v77, 1.0
    %v80 = vrcp.pop %v78
    %v81 = vmul.f32 1.0, %v80
    %v82 = vrcp.pop %v79
    %v83 = vmul.f32 1.0, %v82
    %vm84 = vcmp.ge.f32.partialorder %v66, 0.0
    %vm85 = vcmp.ge.f32.partialorder %v67, 0.0
    %v86 = vsub.f32 1.0, %v81
    %v87 = vsub.f32 1.0, %v83
    %v88 = vsel %vm84, %v81, %v86
    %v89 = vsel %vm85, %v83, %v87
    %v90 = vmax.f32 %v66, 0.0
    %v91 = vmax.f32 %v67, 0.0
    %v92 = vmul.f32 %v66, %v68
    %v93 = vmul.f32 %v67, %v69
    %v94 = vsub.f32 %v90, %v92
    %v95 = vsub.f32 %v91, %v93
    %v96 = vadd.f32 %v75, 1.0
    %v97 = vlog2.pop %v96
    %v98 = vmul.f32 %v97, 0.6931472
    %v99 = vmul.f32 -0.5, %v75
    %v100 = vadd.f32 %v99, 1.0
    %v101 = vmul.f32 %v100, %v75
    %v102 = vand.u32 2147483647, %v75
    %vm103 = vcmp.lt.f32.partialorder %v102, 0.0004427343
    %v104 = vsel %vm103, %v101, %v98
    %v105 = vadd.f32 %v77, 1.0
    %v106 = vlog2.pop %v105
    %v107 = vmul.f32 %v106, 0.6931472
    %v108 = vmul.f32 -0.5, %v77
    %v109 = vadd.f32 %v108, 1.0
    %v110 = vmul.f32 %v109, %v77
    %v111 = vand.u32 2147483647, %v77
    %vm112 = vcmp.lt.f32.partialorder %v111, 0.0004427343
    %v113 = vsel %vm112, %v110, %v107
    %v114 = vadd.f32 %v94, %v104
    %v115 = vadd.f32 %v95, %v113
    %v116 = vadd.f32 %v88, %v68
    %v117 = vadd.f32 %v89, %v69
    %v118 = vmul.f32 %v88, %v68
    %v119 = vmul.f32 %v89, %v69
    %v120 = vmul.f32 %v118, 2.0
    %v121 = vmul.f32 %v119, 2.0
    %v122 = vsub.f32 %v116, %v120
    %v123 = vsub.f32 %v117, %v121
    %v124 = vmul.f32 %v122, %v122
    %v125 = vmul.f32 %v123, %v123
    %v126 = vmul.f32 %v114, %v124
    %v127 = vmul.f32 %v115, %v125
    %v128 = vmul.f32 %v68, -0.5
    %v129 = vmul.f32 %v69, -0.5
    %v130 = vadd.f32 %v128, 0.75
    %v131 = vadd.f32 %v129, 0.75
    %v132 = vmul.f32 %v130, %v126
    %v133 = vmul.f32 %v131, %v127
    %p134 = scmp.lt.s32.totalorder %s60, 0
    // Predicated region
    $region22: #{tpu_custom_call.1} parent=1 // pred_check
      %p135 = pneg %p134
    $region23: #{tpu_custom_call.1} parent=1 // pred_check_branch
      %137 = sbr.rel (%p135) target = $region25
    $region24: #{tpu_custom_call.1} parent=1 // pred_region
      %v138 = vld [vmem:[#allocation7] sm:$0xff]
      %v139 = vadd.f32 %v132, %v133
      %v140 = vadd.f32 %v138, %v139
      %141 = vst [vmem:[#allocation7] sm:$0xff] %v140
    $region25: #{tpu_custom_call.1} parent=1 // pred_fallthru
      _
    %p142 = scmp.eq.s32.totalorder %s60, 0
    // Predicated region
    $region26: #{tpu_custom_call.1} parent=1 // pred_check
      %p143 = pneg %p142
    $region27: #{tpu_custom_call.1} parent=1 // pred_check_branch
      %145 = sbr.rel (%p143) target = $region29
    $region28: #{tpu_custom_call.1} parent=1 // pred_region
      %v146 = vld [vmem:[#allocation7] sm:$0xff]
      %v147 = vadd.f32 %v132, %v133
      %v148 = vadd.f32 %v146, %v147
      %149 = vst [vmem:[#allocation7] sm:$0xff] %v148
    $region29: #{tpu_custom_call.1} parent=1 // pred_fallthru
      _
    // Predicated region
    $region30: #{tpu_custom_call.1} parent=1 // pred_check
      _
    $region31: #{tpu_custom_call.1} parent=1 // pred_check_branch
      %151 = sbr.rel (0) target = $region33
    $region32: #{tpu_custom_call.1} parent=1 // pred_region
      %s153 = ssub.s32 128, 128
      %154 = vsyncadd [#allocation4], %s153
      %s156 = sshll.u32 [#allocation7], 4
      %s157 = int_to_ptr.vmem [resolvable:$true] %s156
      %159 = dma.vmem_to_hbm [thread:$0]  %s157, 128, %s2, [#allocation4]
    $region33: #{tpu_custom_call.1} parent=1 // pred_fallthru
      _
    // Predicated region
    $region34: #{tpu_custom_call.1} parent=1 // pred_check
      _
    $region35: #{tpu_custom_call.1} parent=1 // pred_check_branch
      %161 = sbr.rel (0) target = $region37
    $region36: #{tpu_custom_call.1} parent=1 // pred_region
      %162 = dma.done [#allocation4], 128
    $region37: #{tpu_custom_call.1} parent=1 // pred_fallthru
      _
    %163 = vsyncpa [#allocation3], 1
    %164 = vsyncpa [#allocation6], 1
    %165 = vsyncpa [#allocation4], 1

</llo_original>
